<compile_context>
chip_gen: v7x
topology: tpu7x:2x2x1
jax: 0.10.0
libtpu: 0.0.40
codegen_flags: <defaults>
</compile_context>

<pallas_src>
import math

import jax
import jax.numpy as jnp
from jax.experimental import pallas as pl
from jax.experimental.pallas import tpu as pltpu


_MIN_PALLAS_BYTES = 32 * 1024          # below this, plain XLA fusion wins
_TARGET_TILE_BYTES = 6 * 1024 * 1024   # per x tile (double-buffered x+out ~ 4x)
_MAX_TILE_ROWS = 4096                  # row-tile cap (perf plateaus ~512-1024)
_VMEM_LIMIT_BYTES = 48 * 1024 * 1024   # > v5e 16 MiB default, < v7x 64 MiB phys


def _round_up(a, b):
    return -(-a // b) * b


def _sublane(dtype):
    # Second-to-last dim packing: 8 for 4-byte, 16 for 2-byte, 32 for 1-byte.
    return 8 * (4 // jnp.dtype(dtype).itemsize)


def _choose_tile_f(f_eff, cap=2048):
    if f_eff % 128 != 0:
        return f_eff                   # full-width block (legal: equals array dim)
    if f_eff <= cap:
        return f_eff
    t = (cap // 128) * 128
    while t >= 128:
        if f_eff % t == 0:
            return t
        t -= 128
    return f_eff


def _simpler_linear_kernel(x_ref, w_ref, b_ref, o_ref):
    # Elementwise hot path on the VPU; compute in f32, cast on store.
    x = x_ref[...].astype(jnp.float32)          # (tile_rows, tile_f)
    w = w_ref[...].astype(jnp.float32)          # (1, tile_f) -> broadcast
    b = b_ref[...].astype(jnp.float32)          # (1, tile_f)
    o_ref[...] = (x * w + b).astype(o_ref.dtype)


def simpler_linear(x, weight=None, bias=None, *, force_pallas=False):
    """y = x * weight + bias along the last axis (SimplerLinear forward)."""
    assert weight is not None or bias is not None
    f = x.shape[-1]
    if weight is None:
        weight = jnp.ones((f,), dtype=x.dtype)
    if bias is None:
        bias = jnp.zeros((f,), dtype=x.dtype)
    assert weight.shape == (f,)
    assert bias.shape == (f,)

    out_dtype = jnp.result_type(x.dtype, weight.dtype, bias.dtype)
    itemsize = jnp.dtype(x.dtype).itemsize

    # Tiny inputs: pallas_call launch overhead dwarfs the data movement.
    if not force_pallas and x.size * itemsize < _MIN_PALLAS_BYTES:
        return (x.astype(jnp.float32) * weight.astype(jnp.float32)
                + bias.astype(jnp.float32)).astype(out_dtype)

    lead = x.shape[:-1]
    rows = math.prod(lead) if lead else 1
    x2d = x.reshape(rows, f)

    # Lane-density fix: fold k rows into the lane axis when F < 128.
    fold = 1
    w1, b1 = weight, bias
    if f < 128 and 128 % f == 0:
        fold = 128 // f
        rows_f = _round_up(rows, fold)
        if rows_f != rows:
            x2d = jnp.pad(x2d, ((0, rows_f - rows), (0, 0)))
        x2d = x2d.reshape(rows_f // fold, fold * f)
        w1 = jnp.tile(weight, fold)
        b1 = jnp.tile(bias, fold)

    rows_eff, f_eff = x2d.shape
    w2d = w1.reshape(1, f_eff)
    b2d = b1.reshape(1, f_eff)

    # Tile selection: feature tile (lane-aligned), dtype-aware row tile sized to
    # a VMEM budget that is safe on v7x (64 MiB) / v6e / v5e.
    tile_f = _choose_tile_f(f_eff)
    sub = _sublane(x.dtype)
    max_rows = max(sub, (_TARGET_TILE_BYTES // max(1, tile_f * itemsize)) // sub * sub)
    tile_rows = min(_MAX_TILE_ROWS, max_rows)

    rows_aligned = _round_up(rows_eff, sub)
    tile_rows = min(tile_rows, rows_aligned)
    if rows_aligned >= 2 * sub:
        # Prefer >= 2 steps on the parallel row axis (v7x has 2 TensorCores).
        half = _round_up(-(-rows_aligned // 2), sub)
        tile_rows = min(tile_rows, max(sub, half))
    tile_rows = max(sub, (tile_rows // sub) * sub)

    rows_pad = _round_up(rows_eff, tile_rows)
    if rows_pad != rows_eff:
        x2d = jnp.pad(x2d, ((0, rows_pad - rows_eff), (0, 0)))

    grid = (rows_pad // tile_rows, f_eff // tile_f)

    out2d = pl.pallas_call(
        _simpler_linear_kernel,
        out_shape=jax.ShapeDtypeStruct((rows_pad, f_eff), out_dtype),
        grid_spec=pltpu.PrefetchScalarGridSpec(
            num_scalar_prefetch=0,
            grid=grid,
            in_specs=[
                pl.BlockSpec((tile_rows, tile_f), lambda i, j: (i, j)),
                pl.BlockSpec((1, tile_f), lambda i, j: (0, j)),
                pl.BlockSpec((1, tile_f), lambda i, j: (0, j)),
            ],
            out_specs=pl.BlockSpec((tile_rows, tile_f), lambda i, j: (i, j)),
        ),
        compiler_params=pltpu.CompilerParams(
            dimension_semantics=("parallel", "parallel"),
            vmem_limit_bytes=_VMEM_LIMIT_BYTES,
        ),
    )(x2d, w2d, b2d)

    out2d = out2d[:rows_eff]
    if fold > 1:
        out2d = out2d.reshape(rows_eff * fold, f)
    out2d = out2d[:rows]
    return out2d.reshape(*lead, f)


if __name__ == "__main__":
    key = jax.random.PRNGKey(0)
    k_x, k_w, k_b, k_x2, k_x3, k_w3, k_b3 = jax.random.split(key, 7)

    # --- Test 1: module config (in_features=32, weight=True, bias=True) -----
    in_features = 32
    bound = 1.0 / math.sqrt(in_features)
    weight = jax.random.uniform(
        k_w, (in_features,), minval=-bound, maxval=bound, dtype=jnp.float32)
    bias = jax.random.uniform(
        k_b, (in_features,), minval=-bound, maxval=bound, dtype=jnp.float32)
    x = jax.random.normal(k_x, (2, 8, in_features), dtype=jnp.float32)

    out = jax.block_until_ready(simpler_linear(x, weight, bias, force_pallas=True))
    ref = x * weight + bias
    assert out.shape == x.shape
    assert jnp.allclose(out, ref, atol=1e-6, rtol=1e-6)

    # --- Test 2: non-divisible rows -> padding + fold + multi-step grid ------
    x2 = jax.random.normal(k_x2, (4, 100, in_features), dtype=jnp.float32)
    out2 = jax.block_until_ready(simpler_linear(x2, weight, bias))
    ref2 = x2 * weight + bias
    assert out2.shape == x2.shape
    assert jnp.allclose(out2, ref2, atol=1e-6, rtol=1e-6)

    # --- Test 3: bf16 path (dtype-aware sublane tiling, f32 compute) ---------
    f3 = 256
    bound3 = 1.0 / math.sqrt(f3)
    w3 = jax.random.uniform(
        k_w3, (f3,), minval=-bound3, maxval=bound3, dtype=jnp.float32
    ).astype(jnp.bfloat16)
    b3 = jax.random.uniform(
        k_b3, (f3,), minval=-bound3, maxval=bound3, dtype=jnp.float32
    ).astype(jnp.bfloat16)
    x3 = jax.random.normal(k_x3, (3, 50, f3), dtype=jnp.float32).astype(jnp.bfloat16)
    out3 = jax.block_until_ready(simpler_linear(x3, w3, b3))
    ref3 = (x3.astype(jnp.float32) * w3.astype(jnp.float32)
            + b3.astype(jnp.float32)).astype(jnp.bfloat16)
    assert out3.shape == x3.shape
    assert jnp.allclose(out3.astype(jnp.float32), ref3.astype(jnp.float32),
                        atol=2e-2, rtol=2e-2)

    print("KERNEL_OK")
</pallas_src>

<mosaic_0001>
module attributes {stable_mosaic.version = 11 : i64} {
  func.func @_simpler_linear_kernel(%arg0: i32, %arg1: i32, %arg2: memref<8x128xf32, #tpu.memory_space<vmem>>, %arg3: memref<1x128xf32, #tpu.memory_space<vmem>>, %arg4: memref<1x128xf32, #tpu.memory_space<vmem>>, %arg5: memref<8x128xf32, #tpu.memory_space<vmem>>) attributes {dimension_semantics = [#tpu.dimension_semantics<parallel>, #tpu.dimension_semantics<parallel>], iteration_bounds = array<i64: 1, 1>, scalar_prefetch = 0 : i64, scratch_operands = 0 : i64, tpu.core_type = #tpu.core_type<tc>, window_params = [{transform_indices = @transform_0, window_bounds = array<i64: 8, 128>}, {transform_indices = @transform_1, window_bounds = array<i64: 1, 128>}, {transform_indices = @transform_2, window_bounds = array<i64: 1, 128>}, {transform_indices = @transform_3, window_bounds = array<i64: 8, 128>}]} {
    %c0 = arith.constant 0 : index
    %c0_0 = arith.constant 0 : index
    %0 = vector.load %arg2[%c0, %c0_0] : memref<8x128xf32, #tpu.memory_space<vmem>>, vector<8x128xf32>
    %c0_1 = arith.constant 0 : index
    %c0_2 = arith.constant 0 : index
    %1 = vector.load %arg3[%c0_1, %c0_2] : memref<1x128xf32, #tpu.memory_space<vmem>>, vector<1x128xf32>
    %c0_3 = arith.constant 0 : index
    %c0_4 = arith.constant 0 : index
    %2 = vector.load %arg4[%c0_3, %c0_4] : memref<1x128xf32, #tpu.memory_space<vmem>>, vector<1x128xf32>
    %3 = vector.broadcast %1 : vector<1x128xf32> to vector<8x128xf32>
    %4 = arith.mulf %0, %3 : vector<8x128xf32>
    %5 = vector.broadcast %2 : vector<1x128xf32> to vector<8x128xf32>
    %6 = arith.addf %4, %5 : vector<8x128xf32>
    %c0_5 = arith.constant 0 : index
    %c0_6 = arith.constant 0 : index
    %7 = vector.load %arg5[%c0_5, %c0_6] : memref<8x128xf32, #tpu.memory_space<vmem>>, vector<8x128xf32>
    tpu.vector_store %arg5[%c0_5, %c0_6], %6 {strides = array<i32>} : memref<8x128xf32, #tpu.memory_space<vmem>>, vector<8x128xf32>,
    return
  }
  func.func @transform_0(%arg0: i32, %arg1: i32) -> (i32, i32) {
    %c0_i32 = arith.constant 0 : i32
    return %arg0, %arg1 : i32, i32
  }
  func.func @transform_1(%arg0: i32, %arg1: i32) -> (i32, i32) {
    %c0_i32 = arith.constant 0 : i32
    %c0_i32_0 = arith.constant 0 : i32
    return %c0_i32, %arg1 : i32, i32
  }
  func.func @transform_2(%arg0: i32, %arg1: i32) -> (i32, i32) {
    %c0_i32 = arith.constant 0 : i32
    %c0_i32_0 = arith.constant 0 : i32
    return %c0_i32, %arg1 : i32, i32
  }
  func.func @transform_3(%arg0: i32, %arg1: i32) -> (i32, i32) {
    %c0_i32 = arith.constant 0 : i32
    return %arg0, %arg1 : i32, i32
  }
}

</mosaic_0001>

<llo_original>
// kernel: tpu_custom_call.1
$region0: #{tpu_custom_call.1}
  #allocation0 [shape = 'u32[]', space=smem, size = 0x4, offset = 0x4, fixed_abs, tag = 'smem constant byte address 0x4 - core index']
  #allocation1 [shape = 'u32[144,128]{1,0:T(1,128)}', space=vmem, size = 0x12000, scoped, tag = 'internal scratch']
  %s0 = inlined_call_operand.hbm [shape: f32[8,128], index: 0, kind: input, shape index: {}]
  %s1 = inlined_call_operand.vmem [shape: f32[1,128], index: 1, kind: input, shape index: {}]
  %s2 = inlined_call_operand.vmem [shape: f32[1,128], index: 2, kind: input, shape index: {}]
  %s3 = inlined_call_operand.hbm [shape: f32[8,128], index: 3, kind: output, shape index: {}]
  %s4 = sld [smem:[#allocation0]]
  $region26: #{tpu_custom_call.1} parent=0
    _
  %s6 = ssub.s32 1, %s4
  %s7 = scalar_select 0, %s6, %s4
  $region1: #{tpu_custom_call.1} parent=0
    #allocation2 [shape = 'u8[4096]{0}', space=vmem, size = 0x1000, scoped, tag = 'input window, operand 0, single buffered']
    #allocation3 [shape = 's32[1]{0}', space=sflag, size = 0x4, scoped, tag = 'scoped memory for tpu_custom_call.1']
    #allocation4 [shape = 's32[1]{0}', space=sflag, size = 0x4, scoped, tag = 'scoped memory for tpu_custom_call.1']
    #allocation5 [shape = 'u8[4096]{0}', space=vmem, size = 0x1000, scoped, tag = 'output window, operand 0, single buffered']
    %8 = vsyncpa [#allocation3], 0
    %9 = vsyncpa [#allocation4], 0
    // Predicated region
    $region2: #{tpu_custom_call.1} parent=1 // pred_check
      _
    $region3: #{tpu_custom_call.1} parent=1 // pred_check_branch
      %11 = sbr.rel (0) target = $region5
    $region4: #{tpu_custom_call.1} parent=1 // pred_region
      %s13 = ssub.s32 128, 128
      %14 = vsyncadd [#allocation3], %s13
      %s16 = sshll.u32 [#allocation2], 4
      %s17 = int_to_ptr.vmem [resolvable:$true] %s16
      %19 = dma.hbm_to_vmem [thread:$0]  %s0, 128, %s17, [#allocation3]
    $region5: #{tpu_custom_call.1} parent=1 // pred_fallthru
      _
    // Predicated region
    $region6: #{tpu_custom_call.1} parent=1 // pred_check
      _
    $region7: #{tpu_custom_call.1} parent=1 // pred_check_branch
      %21 = sbr.rel (0) target = $region9
    $region8: #{tpu_custom_call.1} parent=1 // pred_region
      _
    $region9: #{tpu_custom_call.1} parent=1 // pred_fallthru
      _
    // Predicated region
    $region10: #{tpu_custom_call.1} parent=1 // pred_check
      _
    $region11: #{tpu_custom_call.1} parent=1 // pred_check_branch
      %23 = sbr.rel (0) target = $region13
    $region12: #{tpu_custom_call.1} parent=1 // pred_region
      _
    $region13: #{tpu_custom_call.1} parent=1 // pred_fallthru
      _
    // Predicated region
    $region14: #{tpu_custom_call.1} parent=1 // pred_check
      _
    $region15: #{tpu_custom_call.1} parent=1 // pred_check_branch
      %25 = sbr.rel (0) target = $region17
    $region16: #{tpu_custom_call.1} parent=1 // pred_region
      %26 = dma.done [#allocation3], 128
    $region17: #{tpu_custom_call.1} parent=1 // pred_fallthru
      _
    %v27 = vld [vmem:[#allocation2] sm:$0xff]
    %v28 = vld [vmem:[%s1] sm:$0x1]
    %v29 = vld [vmem:[%s2] sm:$0x1]
    %v31 = vlaneseq
    %v32 = vshrl.u32 %v31, 7
    %v33 = vsub.s32 0, %v32
    %v34 = vrot.slane %v28, %v33
    %v36 = vmul.f32 %v27, %v34
    %v38 = vlaneseq
    %v39 = vshrl.u32 %v38, 7
    %v40 = vsub.s32 0, %v39
    %v41 = vrot.slane %v29, %v40
    %v43 = vadd.f32 %v36, %v41
    %44 = vst [vmem:[#allocation5] sm:$0xff] %v43
    // Predicated region
    $region18: #{tpu_custom_call.1} parent=1 // pred_check
      _
    $region19: #{tpu_custom_call.1} parent=1 // pred_check_branch
      %46 = sbr.rel (0) target = $region21
    $region20: #{tpu_custom_call.1} parent=1 // pred_region
      %s48 = ssub.s32 128, 128
      %49 = vsyncadd [#allocation4], %s48
      %s51 = sshll.u32 [#allocation5], 4
      %s52 = int_to_ptr.vmem [resolvable:$true] %s51
      %54 = dma.vmem_to_hbm [thread:$0]  %s52, 128, %s3, [#allocation4]
    $region21: #{tpu_custom_call.1} parent=1 // pred_fallthru
      _
    // Predicated region
    $region22: #{tpu_custom_call.1} parent=1 // pred_check
      _
    $region23: #{tpu_custom_call.1} parent=1 // pred_check_branch
      %56 = sbr.rel (0) target = $region25
    $region24: #{tpu_custom_call.1} parent=1 // pred_region
      %57 = dma.done [#allocation4], 128
    $region25: #{tpu_custom_call.1} parent=1 // pred_fallthru
      _
    %58 = vsyncpa [#allocation3], 1
    %59 = vsyncpa [#allocation4], 1

</llo_original>
